<compile_context>
chip_gen: v7x
topology: tpu7x:2x2x1
jax: 0.10.0
libtpu: 0.0.40
codegen_flags: <defaults>
</compile_context>

<pallas_src>
import jax
import jax.numpy as jnp
from jax.experimental import pallas as pl
from jax.experimental.pallas import tpu as pltpu


def _round_up(x, m):
    return ((x + m - 1) // m) * m


def _vmem_capacity_bytes():
    try:
        return int(pltpu.get_tpu_info().vmem_capacity_bytes)
    except Exception:
        return 64 * 1024 * 1024          # conservative default (v7x per-TC VMEM)


# ---------------------------------------------------------------------------
# Path A: resident table slice in VMEM, one-hot MXU gather per output block.
# ---------------------------------------------------------------------------
_MAX_ONEHOT_P = 2048          # beyond this, one-hot matmul flops exceed the
                              # HBM roofline -> use the row-DMA fallback
_TARGET_BLOCK_BYTES = 2 << 20  # per-buffer output-block target (~roofline tile)
_MAX_ROWS_PER_STEP = 512


def _onehot_gather_kernel(idx_ref, table_ref, out_ref):
    # idx_ref  : (rows, 1) int32  — gather indices for this output block
    # table_ref: (P, tile_e)      — resident table slice (same block over rows)
    # out_ref  : (rows, tile_e)
    rows = out_ref.shape[0]
    P = table_ref.shape[0]
    pos = jax.lax.broadcasted_iota(jnp.int32, (rows, P), 1)
    onehot = (idx_ref[...] == pos).astype(table_ref.dtype)          # (rows, P)
    # One MXU matmul == vectorized row gather; one unmasked lane-dense store.
    out_ref[...] = jnp.dot(
        onehot, table_ref[...], preferred_element_type=jnp.float32
    ).astype(out_ref.dtype)


def _choose_row_tile(n8, tile_e, itemsize, p_pad):
    # rows/step: multiple of 8, bounded so the output block and the one-hot
    # operand each stay ~<= _TARGET_BLOCK_BYTES; prefer a divisor of n8 so no
    # tail padding (and no extra output slice) is needed.
    cap = min(
        _MAX_ROWS_PER_STEP,
        n8,
        max(8, (_TARGET_BLOCK_BYTES // max(1, tile_e * itemsize)) // 8 * 8),
        max(8, (_TARGET_BLOCK_BYTES // max(1, p_pad * 4)) // 8 * 8),
    )
    best_div = 8
    t = 8
    while t <= cap:
        if n8 % t == 0:
            best_div = t
        t += 8
    if best_div >= min(cap, 64) or n8 <= 128:
        return best_div
    return cap


def _plan_resident_path(n, P, E, itemsize, budget):
    """Returns (rows_per_step, tile_e, vmem_needed) or None if it won't fit."""
    if P > _MAX_ONEHOT_P:
        return None
    n8 = _round_up(n, 8)
    p_pad = _round_up(P, 128)
    if E % 128 == 0:
        col_candidates = [c for c in range(E, 0, -128) if E % c == 0]
    else:
        col_candidates = [E]                     # must keep full E per block
    for te in col_candidates:
        tr = _choose_row_tile(n8, te, itemsize, p_pad)
        need = (
            2 * P * te * itemsize        # table slice (double-buffered input)
            + 2 * tr * te * itemsize     # output blocks (double-buffered)
            + 2 * tr * 4                 # index-column blocks
            + tr * p_pad * 4             # one-hot operand
            + tr * te * 4                # f32 matmul result before cast
            + (2 << 20)                  # slack for compiler scratch
        )
        if need <= budget:
            return tr, te, need
    return None


def _resident_gather(idx_flat, table, n, rows_per_step, tile_e, vmem_needed, cap):
    P, E = table.shape
    n_pad = _round_up(n, rows_per_step)
    idx = jnp.pad(idx_flat, (0, n_pad - n)).reshape(n_pad, 1)
    grid = (E // tile_e, n_pad // rows_per_step)   # E-axis outermost: table
                                                   # slice read from HBM once
    out_flat = pl.pallas_call(
        _onehot_gather_kernel,
        out_shape=jax.ShapeDtypeStruct((n_pad, E), table.dtype),
        grid=grid,
        in_specs=[
            pl.BlockSpec((rows_per_step, 1), lambda e, i: (i, 0)),
            pl.BlockSpec((P, tile_e), lambda e, i: (0, e)),
        ],
        out_specs=pl.BlockSpec((rows_per_step, tile_e), lambda e, i: (i, e)),
        compiler_params=pltpu.CompilerParams(
            dimension_semantics=("parallel", "parallel"),
            vmem_limit_bytes=int(min(cap, max(vmem_needed + (4 << 20), 32 << 20))),
        ),
    )(idx, table)
    return out_flat, n_pad


# ---------------------------------------------------------------------------
# Path B: table stays in HBM; row DMAs go straight into the output block.
# ---------------------------------------------------------------------------
_GROUP = 16   # row DMAs in flight per grid step


def _hbm_row_gather_kernel(idx_ref, table_hbm, out_ref, sems):
    # idx_ref  : (n_pad,) int32 in SMEM (scalar prefetch)
    # table_hbm: (P, E) left in HBM (memory_space=pl.ANY)
    # out_ref  : (_GROUP, E) output block — rows DMA'd straight into it
    base = pl.program_id(0) * _GROUP
    copies = []
    # Read every idx scalar and launch every row DMA before any wait, so all
    # fetches overlap and the waits can't break SMEM sst->sld forwarding.
    for g in range(_GROUP):
        row = idx_ref[base + g]
        cp = pltpu.make_async_copy(
            table_hbm.at[pl.ds(row, 1), :],
            out_ref.at[pl.ds(g, 1), :],
            sems.at[g],
        )
        cp.start()
        copies.append(cp)
    for cp in copies:          # keep original descriptors (no dummy rebuild)
        cp.wait()
    # TODO(synk): cross-step prefetch (2-deep scratch) would hide even more DMA
    # latency; skipped to keep the fallback simple — Path A covers typical sizes.


def _hbm_row_gather(idx_flat, table, n, cap):
    P, E = table.shape
    itemsize = jnp.dtype(table.dtype).itemsize
    n_pad = _round_up(n, _GROUP)
    idx = jnp.pad(idx_flat, (0, n_pad - n))
    out_flat = pl.pallas_call(
        _hbm_row_gather_kernel,
        out_shape=jax.ShapeDtypeStruct((n_pad, E), table.dtype),
        grid_spec=pltpu.PrefetchScalarGridSpec(
            num_scalar_prefetch=1,                       # indices -> SMEM
            grid=(n_pad // _GROUP,),
            in_specs=[pl.BlockSpec(memory_space=pl.ANY)],    # table in HBM
            out_specs=pl.BlockSpec((_GROUP, E), lambda i, idx_ref: (i, 0)),
            scratch_shapes=[pltpu.SemaphoreType.DMA((_GROUP,))],
        ),
        compiler_params=pltpu.CompilerParams(
            dimension_semantics=("parallel",),
            vmem_limit_bytes=int(
                min(cap, max(2 * _GROUP * E * itemsize + (4 << 20), 32 << 20))),
        ),
    )(idx, table)
    return out_flat, n_pad


# ---------------------------------------------------------------------------
# Public wrapper
# ---------------------------------------------------------------------------
def embedding_lookup(prefix, table, *, force_row_gather=False):
    """out[b, l, :] = table[prefix[b, l], :]  (nn.Embedding forward)."""
    B, L = prefix.shape
    P, E = table.shape
    n = B * L
    itemsize = jnp.dtype(table.dtype).itemsize
    # int32 indices, clamped so a bad index can never become an OOB DMA/slice
    # (torch.nn.Embedding would raise on out-of-range indices instead).
    flat_idx = jnp.clip(prefix.reshape(-1).astype(jnp.int32), 0, P - 1)

    cap = _vmem_capacity_bytes()
    budget = (cap * 3) // 4                       # per-TensorCore VMEM budget
    plan = None if force_row_gather else _plan_resident_path(
        n, P, E, itemsize, budget)

    if plan is not None:
        tr, te, need = plan
        out_flat, n_pad = _resident_gather(flat_idx, table, n, tr, te, need, cap)
    else:
        out_flat, n_pad = _hbm_row_gather(flat_idx, table, n, cap)

    if n_pad != n:
        # TODO(synk): a masked in-kernel tail store would avoid this extra
        # (n, E) copy; row tiles are chosen to divide round_up(n, 8), so this
        # only triggers when batch*prefix_len is not a multiple of 8.
        out_flat = out_flat[:n]
    return out_flat.reshape(B, L, E)


class PrefixEncoderPallas:
    """Pallas port of PrefixEncoder: a single embedding-table lookup."""

    def __init__(self, pre_seq_len, num_hidden_layers, hidden_size,
                 tuning_methods="ours", *, key, dtype=jnp.float32):
        if tuning_methods != "ours":
            embed_dim = hidden_size
        else:
            embed_dim = num_hidden_layers * 2 * hidden_size
        # torch.nn.Embedding default init: N(0, 1).  Pass dtype=jnp.bfloat16 to
        # halve HBM traffic / VMEM footprint of this memory-bound gather.
        self.embedding = jax.random.normal(
            key, (pre_seq_len, embed_dim), dtype=jnp.float32).astype(dtype)

    def __call__(self, prefix):
        return embedding_lookup(prefix, self.embedding)


if __name__ == "__main__":
    # Small config consistent with the module: pre_seq_len=8, 2 layers,
    # hidden=32, tuning_methods='ours'  ->  E = 2*2*32 = 128.
    pre_seq_len = 8
    num_hidden_layers = 2
    hidden_size = 32
    batch = 2
    prefix_len = 8

    key = jax.random.PRNGKey(0)
    k_emb, k_idx = jax.random.split(key)

    enc = PrefixEncoderPallas(pre_seq_len, num_hidden_layers, hidden_size,
                              tuning_methods="ours", key=k_emb)
    prefix = jax.random.randint(k_idx, (batch, prefix_len), 0, pre_seq_len,
                                dtype=jnp.int32)

    ref = jnp.take(enc.embedding, prefix, axis=0)

    # Path A: resident-table one-hot MXU gather.
    past_key_values = jax.block_until_ready(enc(prefix))
    assert past_key_values.shape == (batch, prefix_len,
                                     num_hidden_layers * 2 * hidden_size)
    # Tolerance covers a possible reduced-precision f32 MXU pass; a wrong-row
    # gather would be off by O(1) and still be caught.
    assert jnp.allclose(past_key_values, ref, rtol=5e-3, atol=5e-3)

    # Path B: direct HBM->output row-DMA gather (huge-table fallback), forced
    # here so both code paths are compiled and checked.  This path is exact.
    fallback = jax.block_until_ready(
        embedding_lookup(prefix, enc.embedding, force_row_gather=True))
    assert fallback.shape == past_key_values.shape
    assert jnp.allclose(fallback, ref)

    print("KERNEL_OK")
</pallas_src>

<mosaic_0001>
module attributes {stable_mosaic.version = 11 : i64} {
  func.func @_onehot_gather_kernel(%arg0: i32, %arg1: i32, %arg2: memref<16x1xi32, #tpu.memory_space<vmem>>, %arg3: memref<8x128xf32, #tpu.memory_space<vmem>>, %arg4: memref<16x128xf32, #tpu.memory_space<vmem>>) attributes {dimension_semantics = [#tpu.dimension_semantics<parallel>, #tpu.dimension_semantics<parallel>], iteration_bounds = array<i64: 1, 1>, scalar_prefetch = 0 : i64, scratch_operands = 0 : i64, tpu.core_type = #tpu.core_type<tc>, window_params = [{transform_indices = @transform_0, window_bounds = array<i64: 16, 1>}, {transform_indices = @transform_1, window_bounds = array<i64: 8, 128>}, {transform_indices = @transform_2, window_bounds = array<i64: 16, 128>}]} {
    %0 = tpu.iota {dimensions = array<i32: 1>} : vector<16x8xi32>
    %c0 = arith.constant 0 : index
    %c0_0 = arith.constant 0 : index
    %1 = vector.load %arg2[%c0, %c0_0] : memref<16x1xi32, #tpu.memory_space<vmem>>, vector<16x1xi32>
    %2 = vector.broadcast %1 : vector<16x1xi32> to vector<16x8xi32>
    %3 = arith.cmpi eq, %2, %0 : vector<16x8xi32>
    %4 = arith.extui %3 : vector<16x8xi1> to vector<16x8xi32>
    %5 = arith.sitofp %4 : vector<16x8xi32> to vector<16x8xf32>
    %c0_1 = arith.constant 0 : index
    %c0_2 = arith.constant 0 : index
    %6 = vector.load %arg3[%c0_1, %c0_2] : memref<8x128xf32, #tpu.memory_space<vmem>>, vector<8x128xf32>
    %cst = arith.constant dense<0.000000e+00> : vector<16x128xf32>
    %7 = tpu.matmul %5, %6, %cst {dimension_numbers = #tpu.dot_dimension_numbers<[1], [0], [0], [1], [0, 0, 1, 1], [], []>} : vector<16x8xf32>, vector<8x128xf32>, vector<16x128xf32> -> vector<16x128xf32>
    %c0_3 = arith.constant 0 : index
    %c0_4 = arith.constant 0 : index
    %8 = vector.load %arg4[%c0_3, %c0_4] : memref<16x128xf32, #tpu.memory_space<vmem>>, vector<16x128xf32>
    tpu.vector_store %arg4[%c0_3, %c0_4], %7 {strides = array<i32>} : memref<16x128xf32, #tpu.memory_space<vmem>>, vector<16x128xf32>,
    return
  }
  func.func @transform_0(%arg0: i32, %arg1: i32) -> (i32, i32) {
    %c0_i32 = arith.constant 0 : i32
    %c0_i32_0 = arith.constant 0 : i32
    return %arg1, %c0_i32 : i32, i32
  }
  func.func @transform_1(%arg0: i32, %arg1: i32) -> (i32, i32) {
    %c0_i32 = arith.constant 0 : i32
    %c0_i32_0 = arith.constant 0 : i32
    return %c0_i32, %arg0 : i32, i32
  }
  func.func @transform_2(%arg0: i32, %arg1: i32) -> (i32, i32) {
    %c0_i32 = arith.constant 0 : i32
    return %arg1, %arg0 : i32, i32
  }
}

</mosaic_0001>

<llo_original>
// kernel: tpu_custom_call.1
$region0: #{tpu_custom_call.1}
  #allocation0 [shape = 'u32[]', space=smem, size = 0x4, offset = 0x4, fixed_abs, tag = 'smem constant byte address 0x4 - core index']
  #allocation1 [shape = 'u32[144,128]{1,0:T(1,128)}', space=vmem, size = 0x12000, scoped, tag = 'internal scratch']
  %s0 = inlined_call_operand.vmem [shape: s32[16,1], index: 0, kind: input, shape index: {}]
  %s1 = inlined_call_operand.vmem [shape: f32[8,128], index: 1, kind: input, shape index: {}]
  %s2 = inlined_call_operand.hbm [shape: f32[16,128], index: 2, kind: output, shape index: {}]
  %s3 = sld [smem:[#allocation0]]
  $region18: #{tpu_custom_call.1} parent=0
    _
  %s5 = ssub.s32 1, %s3
  %s6 = scalar_select 0, %s5, %s3
  $region1: #{tpu_custom_call.1} parent=0
    #allocation2 [shape = 'u8[8192]{0}', space=vmem, size = 0x2000, scoped, tag = 'output window, operand 0, single buffered']
    #allocation3 [shape = 's32[1]{0}', space=sflag, size = 0x4, scoped, tag = 'scoped memory for tpu_custom_call.1']
    %7 = vsyncpa [#allocation3], 0
    // Predicated region
    $region2: #{tpu_custom_call.1} parent=1 // pred_check
      _
    $region3: #{tpu_custom_call.1} parent=1 // pred_check_branch
      %9 = sbr.rel (0) target = $region5
    $region4: #{tpu_custom_call.1} parent=1 // pred_region
      _
    $region5: #{tpu_custom_call.1} parent=1 // pred_fallthru
      _
    // Predicated region
    $region6: #{tpu_custom_call.1} parent=1 // pred_check
      _
    $region7: #{tpu_custom_call.1} parent=1 // pred_check_branch
      %11 = sbr.rel (0) target = $region9
    $region8: #{tpu_custom_call.1} parent=1 // pred_region
      _
    $region9: #{tpu_custom_call.1} parent=1 // pred_fallthru
      _
    %v12 = vlaneseq
    %v13 = vand.u32 %v12, 127
    %v14 = vld [vmem:[%s0] sm:$0xff]
    %v15 = vld [vmem:[%s0 + $0x8] sm:$0xff]
    %16 = vset.pattern.permute.xlu0 0
    %17 = vperm.xlu0 %16, %v14
    %v18 = vpop.permute.xlu0 %17
    %19 = vset.pattern.permute.xlu0 0
    %20 = vperm.xlu0 %19, %v15
    %v21 = vpop.permute.xlu0 %20
    %vm22 = vcmp.eq.s32.totalorder %v18, %v13
    %vm23 = vcmp.eq.s32.totalorder %v21, %v13
    %v24 = vsel %vm22, 1, 0
    %v25 = vsel %vm23, 1, 0
    %v26 = vcvt.s32.f32 %v24
    %v27 = vcvt.s32.f32 %v25
    %v28 = vld [vmem:[%s1] sm:$0xff]
    %vm29 = vcmask 64512
    %v31 = vsel %vm29, %v26, 0
    %v34 = vsel %vm29, %v27, 0
    %36 = vmatprep.subr.mxu0 0.0
    %37 = vmatpush1.msra.mxu0 %v28
    %38 = vmatprep.subr.mxu0 0.0
    %39 = vmatpush1.msra.mxu0 0.0
    %40 = vmatprep.subr.mxu0 0.0
    %41 = vmatpush1.msra.mxu0 0.0
    %42 = vmatprep.subr.mxu0 0.0
    %43 = vmatpush1.msra.mxu0 0.0
    %44 = vmatprep.subr.mxu0 0.0
    %45 = vmatpush1.msra.mxu0 0.0
    %46 = vmatprep.subr.mxu0 0.0
    %47 = vmatpush1.msra.mxu0 0.0
    %48 = vmatprep.subr.mxu0 0.0
    %49 = vmatpush1.msra.mxu0 0.0
    %50 = vmatprep.subr.mxu0 0.0
    %51 = vmatpush1.msra.mxu0 0.0
    %52 = vmatprep.subr.mxu0 0.0
    %53 = vmatpush1.msra.mxu0 0.0
    %54 = vmatprep.subr.mxu0 0.0
    %55 = vmatpush1.msra.mxu0 0.0
    %56 = vmatprep.subr.mxu0 0.0
    %57 = vmatpush1.msra.mxu0 0.0
    %58 = vmatprep.subr.mxu0 0.0
    %59 = vmatpush1.msra.mxu0 0.0
    %60 = vmatprep.subr.mxu0 0.0
    %61 = vmatpush1.msra.mxu0 0.0
    %62 = vmatprep.subr.mxu0 0.0
    %63 = vmatpush1.msra.mxu0 0.0
    %64 = vmatprep.subr.mxu0 0.0
    %65 = vmatpush1.msra.mxu0 0.0
    %66 = vmatprep.subr.mxu0 0.0
    %67 = vmatpush1.msra.mxu0 0.0
    %68 = vmatprep.subr.mxu0 0.0
    %69 = vmatpush1.msra.mxu0 0.0
    %70 = vmatprep.subr.mxu0 0.0
    %71 = vmatpush1.msra.mxu0 0.0
    %72 = vmatprep.subr.mxu0 0.0
    %73 = vmatpush1.msra.mxu0 0.0
    %74 = vmatprep.subr.mxu0 0.0
    %75 = vmatpush1.msra.mxu0 0.0
    %76 = vmatprep.subr.mxu0 0.0
    %77 = vmatpush1.msra.mxu0 0.0
    %78 = vmatprep.subr.mxu0 0.0
    %79 = vmatpush1.msra.mxu0 0.0
    %80 = vmatprep.subr.mxu0 0.0
    %81 = vmatpush1.msra.mxu0 0.0
    %82 = vmatprep.subr.mxu0 0.0
    %83 = vmatpush1.msra.mxu0 0.0
    %84 = vmatprep.subr.mxu0 0.0
    %85 = vmatpush1.msra.mxu0 0.0
    %86 = vmatprep.subr.mxu0 0.0
    %87 = vmatpush1.msra.mxu0 0.0
    %88 = vmatprep.subr.mxu0 0.0
    %89 = vmatpush1.msra.mxu0 0.0
    %90 = vmatprep.subr.mxu0 0.0
    %91 = vmatpush1.msra.mxu0 0.0
    %92 = vmatprep.subr.mxu0 0.0
    %93 = vmatpush1.msra.mxu0 0.0
    %94 = vmatprep.subr.mxu0 0.0
    %95 = vmatpush1.msra.mxu0 0.0
    %96 = vmatprep.subr.mxu0 0.0
    %97 = vmatpush1.msra.mxu0 0.0
    %98 = vmatprep.subr.mxu0 0.0
    %99 = vmatpush1.msra.mxu0 0.0
    %100 = vmatprep.mubr.f32.mxu0 0.0
    %101 = vmatmul.mubr.f32.gmra.mrb[0].mxu0 %v31
    %v102 = vpop.f32.mrb[0].mxu0
    %v103 = vadd.f32 0.0, %v102
    %v104 = vpop.f32.mrb[0].mxu0
    %105 = vmatprep.mubr.f32.mxu0 0.0
    %106 = vmatmul.mubr.f32.gmra.mrb[0].mxu0 %v34
    %v107 = vpop.f32.mrb[0].mxu0
    %v108 = vadd.f32 0.0, %v107
    %v109 = vpop.f32.mrb[0].mxu0
    %110 = vdwg.mxu0
    %111 = vst [vmem:[#allocation2] sm:$0xff] %v103
    %112 = vst [vmem:[#allocation2 + $0x8] sm:$0xff] %v108
    // Predicated region
    $region10: #{tpu_custom_call.1} parent=1 // pred_check
      _
    $region11: #{tpu_custom_call.1} parent=1 // pred_check_branch
      %114 = sbr.rel (0) target = $region13
    $region12: #{tpu_custom_call.1} parent=1 // pred_region
      %s116 = ssub.s32 256, 256
      %117 = vsyncadd [#allocation3], %s116
      %s118 = sshll.u32 [#allocation2], 4
      %s119 = int_to_ptr.vmem [resolvable:$true] %s118
      %124 = dma.vmem_to_hbm [thread:$0]  %s119, 256, %s2, [#allocation3], 128, 128, 8
    $region13: #{tpu_custom_call.1} parent=1 // pred_fallthru
      _
    // Predicated region
    $region14: #{tpu_custom_call.1} parent=1 // pred_check
      _
    $region15: #{tpu_custom_call.1} parent=1 // pred_check_branch
      %126 = sbr.rel (0) target = $region17
    $region16: #{tpu_custom_call.1} parent=1 // pred_region
      %127 = dma.done [#allocation3], 256
    $region17: #{tpu_custom_call.1} parent=1 // pred_fallthru
      _
    %128 = vsyncpa [#allocation3], 1

</llo_original>
